<compile_context>
chip_gen: v6e
topology: v6e:2x2x1
jax: 0.10.0
libtpu: 0.0.40
codegen_flags: <defaults>
</compile_context>

<pallas_src>
import functools

import jax
import jax.numpy as jnp
from jax.experimental import pallas as pl
from jax.experimental.pallas import tpu as pltpu


# --------------------------------------------------------------- utilities
def _vmem_capacity_bytes():
    """Physical per-TensorCore VMEM; conservative 64 MiB (v7x) if unknown."""
    try:
        info = pltpu.get_tpu_info()
        cap = getattr(info, "vmem_capacity_bytes", None)
        if cap:
            return int(cap)
    except Exception:
        pass
    return 64 << 20


def _largest_row_tile(L, max_rows):
    """Largest tl (multiple of 8, dividing L) with tl <= max(max_rows, 8)."""
    tl = min(int(max_rows), L)
    tl = max(8, (tl // 8) * 8)
    while L % tl:
        tl -= 8
    return int(tl)


def _fast_path_ok(L, Nb):
    return (Nb <= 128) and (128 % Nb == 0) and ((L * Nb) % 128 == 0) and (L % 8 == 0)


# ----------------------------------------------------------------- kernels
def _head_kernel_lane128(x_ref, w_ref, ba_ref, bflat_ref, atom_ref, bond_ref):
    """Fast path.  Shapes:
       x_ref     (1, TL, d)
       w_ref     (d, 128+Na)   [ W1^T replicated to 128 lanes | Wa^T ]
       ba_ref    (1, Na)
       bflat_ref (1, 8, Wf)    x_j@W2^T + bb, lane-dense, replicated on 8 sublanes
       atom_ref  (1, TL, Na)
       bond_ref  (1, TL, Wf)   Wf = L*Nb (multiple of 128)
    """
    tl = x_ref.shape[1]
    wf = bond_ref.shape[2]

    # One small MXU pass: lane-periodic bond i-contribution + atom logits.
    fused = jnp.dot(x_ref[0], w_ref[...], preferred_element_type=jnp.float32)
    a_slab = fused[:, :128]                              # (TL, 128)
    atom_ref[0] = (fused[:, 128:] + ba_ref[...]).astype(atom_ref.dtype)

    # Free reshape: splitting the row dim at a multiple of 8 keeps the
    # (sublane, lane) tiling unchanged; enables a pure-VPU broadcast add.
    a3 = a_slab.reshape(tl // 8, 8, 128)

    # Expand to the full L*Nb lanes 128 lanes at a time: add + cast + full-width
    # store per group.  No (TL, Wf) f32 temporary is ever materialized.
    for g in range(wf // 128):                           # static unroll
        sl = pl.ds(g * 128, 128)
        bb = bflat_ref[0, :, sl]                         # (8, 128), pre-replicated
        blk = (a3 + bb).astype(bond_ref.dtype)           # (TL//8, 8, 128)
        bond_ref[0, :, sl] = blk.reshape(tl, 128)


def _head_kernel_fallback(x_ref, w_ref, ba_ref, p_ref, bflat_ref,
                          atom_ref, bond_ref, *, nb):
    """Generic path (ragged shapes / L*Nb not a multiple of 128)."""
    x = x_ref[0]                                                        # (TL, d)
    fused = jnp.dot(x, w_ref[...], preferred_element_type=jnp.float32)  # (TL, Nb+Na)
    a = fused[:, :nb]
    atom_ref[0] = (fused[:, nb:] + ba_ref[...]).astype(atom_ref.dtype)
    # MXU-based lane replication with the wide identity-tile P (exact).
    a_rep = jnp.dot(a, p_ref[...], preferred_element_type=jnp.float32)  # (TL, Wf)
    bond_ref[0] = (a_rep + bflat_ref[0]).astype(bond_ref.dtype)


# ----------------------------------------------------------------- wrapper
def template_prediction_head(x, atom_w, atom_b, bond_w, bond_b, *, tl=None):
    """x: [B, L, d]; atom_w: [Na, d]; atom_b: [Na]; bond_w: [Nb, 2d]; bond_b: [Nb]."""
    B, L, d = x.shape
    Na = atom_w.shape[0]
    Nb = bond_w.shape[0]
    Wf = L * Nb
    itemsize = jnp.dtype(x.dtype).itemsize
    cap = _vmem_capacity_bytes()

    w1_t = bond_w[:, :d].T                                    # (d, Nb) acts on x_i
    w2_t = bond_w[:, d:].T                                    # (d, Nb) acts on x_j
    wa_t = atom_w.T                                           # (d, Na)
    ba2 = atom_b.reshape(1, Na).astype(jnp.float32)

    # j-contribution with the bond bias folded in, flattened lane-dense.
    # O(B*L*Nb) work: negligible vs. the [B,L,L,Nb] output.
    b_full = jnp.einsum("bld,dn->bln", x, w2_t,
                        preferred_element_type=jnp.float32) + bond_b.astype(jnp.float32)

    if _fast_path_ok(L, Nb):
        # ---- fast path: lane-periodic slab + 128-lane-group expansion ----
        w1_rep = jnp.tile(w1_t, (1, 128 // Nb))                           # (d, 128)
        w_fused = jnp.concatenate([w1_rep, wa_t], axis=1).astype(x.dtype)  # (d,128+Na)
        b_flat8 = jnp.broadcast_to(b_full.reshape(B, 1, Wf), (B, 8, Wf))   # sublane rep

        if tl is None:
            budget = min(cap * 3 // 8, 48 << 20)              # generation-aware
            resident = 2 * 8 * Wf * 4 + 2 * d * (128 + Na) * itemsize + 2 * Na * 4
            per_row = (2 * Wf * itemsize                      # bond out (dbl-buffered)
                       + 2 * d * itemsize                     # x tile (dbl-buffered)
                       + 2 * Na * itemsize
                       + (128 + Na + 3 * 128) * 4)            # f32 slab / group temps
            tl_max = max(8, max(budget - resident, 1 << 20) // per_row)
            tl_max = min(tl_max, max(8, (4 << 20) // Wf))     # bound unrolled loop
            if B == 1:
                tl_max = min(tl_max, max(8, L // 2))          # >=2 blocks (v7x megacore)
            tl = _largest_row_tile(L, tl_max)
        assert L % tl == 0 and tl % 8 == 0

        need = (2 * tl * d * itemsize
                + 2 * d * (128 + Na) * itemsize + 2 * Na * 4
                + 2 * 8 * Wf * 4
                + 2 * tl * Na * itemsize
                + 2 * tl * Wf * itemsize
                + tl * (128 + Na) * 4 + 4 * tl * 128 * 4)
        vmem_limit = min(max(int(need * 1.25) + (2 << 20), 16 << 20), int(cap * 0.9))

        atom_out, bond_flat = pl.pallas_call(
            _head_kernel_lane128,
            out_shape=(
                jax.ShapeDtypeStruct((B, L, Na), x.dtype),
                jax.ShapeDtypeStruct((B, L, Wf), x.dtype),    # lane-dense bond
            ),
            grid_spec=pltpu.PrefetchScalarGridSpec(
                num_scalar_prefetch=0,
                grid=(B, L // tl),
                in_specs=[
                    pl.BlockSpec((1, tl, d), lambda b, t: (b, t, 0)),
                    pl.BlockSpec((d, 128 + Na), lambda b, t: (0, 0)),
                    pl.BlockSpec((1, Na), lambda b, t: (0, 0)),
                    pl.BlockSpec((1, 8, Wf), lambda b, t: (b, 0, 0)),
                ],
                out_specs=[
                    pl.BlockSpec((1, tl, Na), lambda b, t: (b, t, 0)),
                    pl.BlockSpec((1, tl, Wf), lambda b, t: (b, t, 0)),
                ],
            ),
            compiler_params=pltpu.CompilerParams(
                dimension_semantics=("parallel", "parallel"),
                vmem_limit_bytes=vmem_limit,
            ),
        )(x, w_fused, ba2, b_flat8)
    else:
        # ---- generic fallback (previously validated wide-P kernel) ----
        w_fused = jnp.concatenate([w1_t, wa_t], axis=1).astype(x.dtype)   # (d, Nb+Na)
        p_wide = jnp.tile(jnp.eye(Nb, dtype=jnp.float32), (1, L))         # (Nb, Wf)
        b_flat = b_full.reshape(B, 1, Wf)

        if tl is None:
            budget = min(cap // 4, 24 << 20)
            resident = 2 * (Nb * Wf + Wf) * 4 + 2 * d * (Nb + Na) * itemsize
            per_row = (2 * Wf * itemsize + 2 * Wf * 4        # out tiles + f32 temps
                       + 2 * d * itemsize + 2 * Na * itemsize + (Nb + Na) * 4)
            tl_max = max(1, max(budget - resident, 1 << 20) // per_row)
            if L % 8 == 0 and L > 8:
                tl = _largest_row_tile(L, tl_max)
            else:
                # TODO(synk): ragged L (not a multiple of 8) forces a full-row
                # tile; for very large ragged L this can exceed VMEM (pad L
                # upstream if that case matters).
                tl = L
        assert L % tl == 0

        need = (2 * tl * d * itemsize
                + 2 * d * (Nb + Na) * itemsize + 2 * Na * 4
                + 2 * (Nb * Wf + Wf) * 4
                + 2 * tl * Na * itemsize + 2 * tl * Wf * itemsize
                + tl * (Nb + Na) * 4 + 2 * tl * Wf * 4)
        vmem_limit = min(max(int(need * 1.25) + (2 << 20), 16 << 20), int(cap * 0.9))

        kernel = functools.partial(_head_kernel_fallback, nb=Nb)
        atom_out, bond_flat = pl.pallas_call(
            kernel,
            out_shape=(
                jax.ShapeDtypeStruct((B, L, Na), x.dtype),
                jax.ShapeDtypeStruct((B, L, Wf), x.dtype),
            ),
            grid_spec=pltpu.PrefetchScalarGridSpec(
                num_scalar_prefetch=0,
                grid=(B, L // tl),
                in_specs=[
                    pl.BlockSpec((1, tl, d), lambda b, t: (b, t, 0)),
                    pl.BlockSpec((d, Nb + Na), lambda b, t: (0, 0)),
                    pl.BlockSpec((1, Na), lambda b, t: (0, 0)),
                    pl.BlockSpec((Nb, Wf), lambda b, t: (0, 0)),
                    pl.BlockSpec((1, 1, Wf), lambda b, t: (b, 0, 0)),
                ],
                out_specs=[
                    pl.BlockSpec((1, tl, Na), lambda b, t: (b, t, 0)),
                    pl.BlockSpec((1, tl, Wf), lambda b, t: (b, t, 0)),
                ],
            ),
            compiler_params=pltpu.CompilerParams(
                dimension_semantics=("parallel", "parallel"),
                vmem_limit_bytes=vmem_limit,
            ),
        )(x, w_fused, ba2, p_wide, b_flat)

    # Contiguous minor-dim split: free in HBM.
    return atom_out, bond_flat.reshape(B, L, L, Nb)


# --------------------------------------------------------------- reference
def _reference(x, atom_w, atom_b, bond_w, bond_b):
    d = x.shape[-1]
    atom = jnp.einsum("bld,nd->bln", x, atom_w) + atom_b
    w1, w2 = bond_w[:, :d], bond_w[:, d:]
    ai = jnp.einsum("bld,nd->bln", x, w1)
    aj = jnp.einsum("bld,nd->bln", x, w2)
    bond = ai[:, :, None, :] + aj[:, None, :, :] + bond_b
    return atom, bond


def _run_case(key, B, L, d, num_atom_templates, num_bond_templates):
    Na = num_atom_templates + 1
    Nb = num_bond_templates + 1
    kx, kaw, kab, kbw, kbb = jax.random.split(key, 5)
    x = jax.random.normal(kx, (B, L, d), dtype=jnp.float32)
    atom_w = jax.random.normal(kaw, (Na, d), dtype=jnp.float32) * 0.05
    atom_b = jax.random.normal(kab, (Na,), dtype=jnp.float32) * 0.05
    bond_w = jax.random.normal(kbw, (Nb, 2 * d), dtype=jnp.float32) * 0.05
    bond_b = jax.random.normal(kbb, (Nb,), dtype=jnp.float32) * 0.05

    atom_out, bond_out = template_prediction_head(x, atom_w, atom_b, bond_w, bond_b)
    jax.block_until_ready((atom_out, bond_out))

    atom_ref, bond_ref = _reference(x, atom_w, atom_b, bond_w, bond_b)
    assert atom_out.shape == (B, L, Na)
    assert bond_out.shape == (B, L, L, Nb)
    assert jnp.allclose(atom_out, atom_ref, atol=1e-4, rtol=1e-4)
    assert jnp.allclose(bond_out, bond_ref, atol=1e-4, rtol=1e-4)


if __name__ == "__main__":
    key = jax.random.PRNGKey(0)
    k1, k2 = jax.random.split(key)
    # Spec-sized small case (L*Nb = 64 < 128 -> generic fallback path).
    _run_case(k1, B=2, L=8, d=32, num_atom_templates=15, num_bond_templates=7)
    # Medium case exercising the lane-dense 128-group fast path (L*Nb = 256).
    _run_case(k2, B=2, L=32, d=32, num_atom_templates=15, num_bond_templates=7)
    print("KERNEL_OK")
</pallas_src>

<mosaic_0001>
module attributes {stable_mosaic.version = 11 : i64} {
  func.func @_head_kernel_fallback(%arg0: i32, %arg1: i32, %arg2: memref<1x8x32xf32, #tpu.memory_space<vmem>>, %arg3: memref<32x24xf32, #tpu.memory_space<vmem>>, %arg4: memref<1x16xf32, #tpu.memory_space<vmem>>, %arg5: memref<8x64xf32, #tpu.memory_space<vmem>>, %arg6: memref<1x1x64xf32, #tpu.memory_space<vmem>>, %arg7: memref<1x8x16xf32, #tpu.memory_space<vmem>>, %arg8: memref<1x8x64xf32, #tpu.memory_space<vmem>>) attributes {dimension_semantics = [#tpu.dimension_semantics<parallel>, #tpu.dimension_semantics<parallel>], iteration_bounds = array<i64: 2, 1>, scalar_prefetch = 0 : i64, scratch_operands = 0 : i64, tpu.core_type = #tpu.core_type<tc>, window_params = [{transform_indices = @transform_0, window_bounds = array<i64: 1, 8, 32>}, {pipeline_mode = #tpu.pipeline_mode<synchronous>, transform_indices = @transform_1, window_bounds = array<i64: 32, 24>}, {pipeline_mode = #tpu.pipeline_mode<synchronous>, transform_indices = @transform_2, window_bounds = array<i64: 1, 16>}, {pipeline_mode = #tpu.pipeline_mode<synchronous>, transform_indices = @transform_3, window_bounds = array<i64: 8, 64>}, {transform_indices = @transform_4, window_bounds = array<i64: 1, 1, 64>}, {transform_indices = @transform_5, window_bounds = array<i64: 1, 8, 16>}, {transform_indices = @transform_6, window_bounds = array<i64: 1, 8, 64>}]} {
    %c0 = arith.constant 0 : index
    %c0_0 = arith.constant 0 : index
    %c0_1 = arith.constant 0 : index
    %0 = vector.load %arg2[%c0, %c0_0, %c0_1] : memref<1x8x32xf32, #tpu.memory_space<vmem>>, vector<1x8x32xf32>
    %1 = vector.shape_cast %0 : vector<1x8x32xf32> to vector<8x32xf32>
    %c0_2 = arith.constant 0 : index
    %c0_3 = arith.constant 0 : index
    %2 = vector.load %arg3[%c0_2, %c0_3] : memref<32x24xf32, #tpu.memory_space<vmem>>, vector<32x24xf32>
    %cst = arith.constant dense<0.000000e+00> : vector<8x24xf32>
    %3 = tpu.matmul %1, %2, %cst {dimension_numbers = #tpu.dot_dimension_numbers<[1], [0], [0], [1], [0, 0, 1, 1], [], []>} : vector<8x32xf32>, vector<32x24xf32>, vector<8x24xf32> -> vector<8x24xf32>
    %4 = vector.extract_strided_slice %3 {offsets = [0, 0], sizes = [8, 8], strides = [1, 1]} : vector<8x24xf32> to vector<8x8xf32>
    %5 = vector.extract_strided_slice %3 {offsets = [0, 8], sizes = [8, 16], strides = [1, 1]} : vector<8x24xf32> to vector<8x16xf32>
    %c0_4 = arith.constant 0 : index
    %c0_5 = arith.constant 0 : index
    %6 = vector.load %arg4[%c0_4, %c0_5] : memref<1x16xf32, #tpu.memory_space<vmem>>, vector<1x16xf32>
    %7 = vector.broadcast %6 : vector<1x16xf32> to vector<8x16xf32>
    %8 = arith.addf %5, %7 : vector<8x16xf32>
    %c0_6 = arith.constant 0 : index
    %c0_7 = arith.constant 0 : index
    %c0_8 = arith.constant 0 : index
    %9 = vector.load %arg7[%c0_6, %c0_7, %c0_8] : memref<1x8x16xf32, #tpu.memory_space<vmem>>, vector<1x8x16xf32>
    %10 = vector.shape_cast %9 : vector<1x8x16xf32> to vector<8x16xf32>
    %11 = vector.shape_cast %8 : vector<8x16xf32> to vector<1x8x16xf32>
    tpu.vector_store %arg7[%c0_6, %c0_7, %c0_8], %11 {strides = array<i32>} : memref<1x8x16xf32, #tpu.memory_space<vmem>>, vector<1x8x16xf32>,
    %c0_9 = arith.constant 0 : index
    %c0_10 = arith.constant 0 : index
    %12 = vector.load %arg5[%c0_9, %c0_10] : memref<8x64xf32, #tpu.memory_space<vmem>>, vector<8x64xf32>
    %cst_11 = arith.constant dense<0.000000e+00> : vector<8x64xf32>
    %13 = tpu.matmul %4, %12, %cst_11 {dimension_numbers = #tpu.dot_dimension_numbers<[1], [0], [0], [1], [0, 0, 1, 1], [], []>} : vector<8x8xf32>, vector<8x64xf32>, vector<8x64xf32> -> vector<8x64xf32>
    %c0_12 = arith.constant 0 : index
    %c0_13 = arith.constant 0 : index
    %c0_14 = arith.constant 0 : index
    %14 = vector.load %arg6[%c0_12, %c0_13, %c0_14] : memref<1x1x64xf32, #tpu.memory_space<vmem>>, vector<1x1x64xf32>
    %15 = vector.shape_cast %14 : vector<1x1x64xf32> to vector<1x64xf32>
    %16 = vector.broadcast %15 : vector<1x64xf32> to vector<8x64xf32>
    %17 = arith.addf %13, %16 : vector<8x64xf32>
    %c0_15 = arith.constant 0 : index
    %c0_16 = arith.constant 0 : index
    %c0_17 = arith.constant 0 : index
    %18 = vector.load %arg8[%c0_15, %c0_16, %c0_17] : memref<1x8x64xf32, #tpu.memory_space<vmem>>, vector<1x8x64xf32>
    %19 = vector.shape_cast %18 : vector<1x8x64xf32> to vector<8x64xf32>
    %20 = vector.shape_cast %17 : vector<8x64xf32> to vector<1x8x64xf32>
    tpu.vector_store %arg8[%c0_15, %c0_16, %c0_17], %20 {strides = array<i32>} : memref<1x8x64xf32, #tpu.memory_space<vmem>>, vector<1x8x64xf32>,
    return
  }
  func.func @transform_0(%arg0: i32, %arg1: i32) -> (i32, i32, i32) {
    %c0_i32 = arith.constant 0 : i32
    %c0_i32_0 = arith.constant 0 : i32
    return %arg0, %arg1, %c0_i32 : i32, i32, i32
  }
  func.func @transform_1(%arg0: i32, %arg1: i32) -> (i32, i32) {
    %c0_i32 = arith.constant 0 : i32
    %c0_i32_0 = arith.constant 0 : i32
    %c0_i32_1 = arith.constant 0 : i32
    return %c0_i32, %c0_i32_0 : i32, i32
  }
  func.func @transform_2(%arg0: i32, %arg1: i32) -> (i32, i32) {
    %c0_i32 = arith.constant 0 : i32
    %c0_i32_0 = arith.constant 0 : i32
    %c0_i32_1 = arith.constant 0 : i32
    return %c0_i32, %c0_i32_0 : i32, i32
  }
  func.func @transform_3(%arg0: i32, %arg1: i32) -> (i32, i32) {
    %c0_i32 = arith.constant 0 : i32
    %c0_i32_0 = arith.constant 0 : i32
    %c0_i32_1 = arith.constant 0 : i32
    return %c0_i32, %c0_i32_0 : i32, i32
  }
  func.func @transform_4(%arg0: i32, %arg1: i32) -> (i32, i32, i32) {
    %c0_i32 = arith.constant 0 : i32
    %c0_i32_0 = arith.constant 0 : i32
    %c0_i32_1 = arith.constant 0 : i32
    return %arg0, %c0_i32, %c0_i32_0 : i32, i32, i32
  }
  func.func @transform_5(%arg0: i32, %arg1: i32) -> (i32, i32, i32) {
    %c0_i32 = arith.constant 0 : i32
    %c0_i32_0 = arith.constant 0 : i32
    return %arg0, %arg1, %c0_i32 : i32, i32, i32
  }
  func.func @transform_6(%arg0: i32, %arg1: i32) -> (i32, i32, i32) {
    %c0_i32 = arith.constant 0 : i32
    %c0_i32_0 = arith.constant 0 : i32
    return %arg0, %arg1, %c0_i32 : i32, i32, i32
  }
}

</mosaic_0001>

<llo_original>
// kernel: tpu_custom_call.1
$region0: #{tpu_custom_call.1}
  #allocation0 [shape = 'u32[]', space=smem, size = 0x4, offset = 0x4, fixed_abs, tag = 'smem constant byte address 0x4 - core index']
  #allocation1 [shape = 'u32[144,128]{1,0:T(1,128)}', space=vmem, size = 0x12000, scoped, tag = 'internal scratch']
  %s0 = inlined_call_operand.vmem [shape: f32[2,8,32], index: 0, kind: input, shape index: {}]
  %s1 = inlined_call_operand.vmem [shape: f32[32,24], index: 1, kind: input, shape index: {}]
  %s2 = inlined_call_operand.vmem [shape: f32[1,16], index: 2, kind: input, shape index: {}]
  %s3 = inlined_call_operand.vmem [shape: f32[8,64], index: 3, kind: input, shape index: {}]
  %s4 = inlined_call_operand.vmem [shape: f32[2,1,64], index: 4, kind: input, shape index: {}]
  %s5 = inlined_call_operand.hbm [shape: f32[2,8,16], index: 5, kind: output, shape index: {0}]
  %s6 = inlined_call_operand.hbm [shape: f32[2,8,64], index: 6, kind: output, shape index: {1}]
  %7 = xla_tuple %s5, %s6
  %s8 = sld [smem:[#allocation0]]
  $region61: #{tpu_custom_call.1} parent=0
    _
  %s10 = ssub.s32 1, %s8
  %s11 = scalar_select 0, %s10, %s8
  $region1: #{tpu_custom_call.1} parent=0
    #allocation2 [shape = 'u8[8192]{0}', space=vmem, size = 0x2000, scoped, tag = 'output window, operand 0']
    #allocation3 [shape = 's32[2]{0}', space=sflag, size = 0x8, scoped, tag = 'scoped memory for tpu_custom_call.1']
    #allocation4 [shape = 'u8[8192]{0}', space=vmem, size = 0x2000, scoped, tag = 'output window, operand 1']
    #allocation5 [shape = 's32[2]{0}', space=sflag, size = 0x8, scoped, tag = 'scoped memory for tpu_custom_call.1']
    %12 = vsyncpa [#allocation3], 0
    %s13 = scalar_lea.sflag [#allocation3], 1
    %14 = vsyncpa %s13, 0
    %15 = vsyncpa [#allocation5], 0
    %s16 = scalar_lea.sflag [#allocation5], 1
    %17 = vsyncpa %s16, 0
    loop: start=0, step=1, limit=4
    $region2: #{tpu_custom_call.1} parent=1 // loop_pre_header
      _
    $region3: #{tpu_custom_call.1} parent=1 // loop_header
      %s19 = sphi 0, %s23
      %p20 = scmp.ge.s32.totalorder %s19, 4
      %s26 = sphi 0, %s38
      %s27 = sphi 0, %s34
      %s28 = sphi 0, %s26
      %s29 = sphi 0, %s27
      %s30 = sphi 0, %s28
      %s31 = sphi 0, %s29
      %s43 = sphi 0, %s45
      %s46 = sphi 0, %s43
      %s47 = sphi 0, %s46
      %s63 = sphi 0, %s47
      %s67 = sphi 0, %s67
      %s69 = sphi 0, %s67
      %s70 = sphi 0, %s69
      %s84 = sphi 0, %s70
      %s88 = sphi 0, %s88
      %s90 = sphi 0, %s88
      %s91 = sphi 0, %s90
      %s105 = sphi 0, %s91
      %s109 = sphi 0, %s109
      %s111 = sphi 0, %s109
      %s112 = sphi 0, %s111
      %s126 = sphi 0, %s112
      %s132 = sphi 0, %s134
      %s135 = sphi 0, %s132
      %s136 = sphi 0, %s135
      %s152 = sphi 0, %s136
      %s160 = sphi 0, %s162
      %s163 = sphi 0, %s160
      %s164 = sphi 0, %s163
      %s180 = sphi 0, %s164
      %s188 = sphi 0, %s190
      %s191 = sphi 0, %s188
      %s192 = sphi 0, %s191
      %s208 = sphi 0, %s192
    $region4: #{tpu_custom_call.1} parent=1 // loop_header_branch
      %22 = sbr.rel (%p20) target = $region8
    $region5: #{tpu_custom_call.1} parent=1 // loop_body
      %s24 = ssub.s32 %s19, 1
      %s25 = ssub.s32 %s19, 2
      %s32 = sadd.s32 1, %s27
      %p33 = scmp.ge.s32.totalorder %s32, 1
      %s34 = scalar_select %p33, 0, %s32
      %s35 = sadd.s32 1, %s26
      %s36 = scalar_select %p33, %s35, %s26
      %p37 = scmp.ge.s32.totalorder %s36, 2
      %s38 = scalar_select %p37, 0, %s36
      %s39 = ssub.s32 %s26, %s38
      %s40 = ssub.s32 %s27, %s34
      %s41 = sor.u32 %s39, %s40
      %p42 = scmp.eq.s32.totalorder %s41, 0
      %s44 = sadd.s32 %s43, 1
      %s45 = scalar_select %p42, %s43, %s44
      %p48 = pneg %p42
      %p49 = scmp.eq.s32.totalorder %s19, 1
      %p50 = por %p48, %p49
      %p51 = scmp.ne.s32.totalorder %s43, %s46
      %p52 = scmp.eq.s32.totalorder %s19, 0
      %p53 = por %p51, %p52
      %p54 = scmp.ne.s32.totalorder %s43, %s46
      %p55 = scmp.eq.s32.totalorder %s24, 1
      %p56 = por %p54, %p55
      %p57 = scmp.ne.s32.totalorder %s46, %s47
      %p58 = scmp.eq.s32.totalorder %s24, 0
      %p59 = por %p57, %p58
      %p60 = scmp.ne.s32.totalorder %s46, %s47
      %p61 = scmp.eq.s32.totalorder %s25, 1
      %p62 = por %p60, %p61
      %p64 = scmp.ne.s32.totalorder %s47, %s63
      %p65 = scmp.eq.s32.totalorder %s25, 0
      %p66 = por %p64, %p65
      %s68 = sadd.s32 %s67, 1
      %p71 = scmp.eq.s32.totalorder %s19, 1
      %p72 = scmp.ne.s32.totalorder %s67, %s69
      %p73 = scmp.eq.s32.totalorder %s19, 0
      %p74 = por %p72, %p73
      %p75 = scmp.ne.s32.totalorder %s67, %s69
      %p76 = scmp.eq.s32.totalorder %s24, 1
      %p77 = por %p75, %p76
      %p78 = scmp.ne.s32.totalorder %s69, %s70
      %p79 = scmp.eq.s32.totalorder %s24, 0
      %p80 = por %p78, %p79
      %p81 = scmp.ne.s32.totalorder %s69, %s70
      %p82 = scmp.eq.s32.totalorder %s25, 1
      %p83 = por %p81, %p82
      %p85 = scmp.ne.s32.totalorder %s70, %s84
      %p86 = scmp.eq.s32.totalorder %s25, 0
      %p87 = por %p85, %p86
      %s89 = sadd.s32 %s88, 1
      %p92 = scmp.eq.s32.totalorder %s19, 1
      %p93 = scmp.ne.s32.totalorder %s88, %s90
      %p94 = scmp.eq.s32.totalorder %s19, 0
      %p95 = por %p93, %p94
      %p96 = scmp.ne.s32.totalorder %s88, %s90
      %p97 = scmp.eq.s32.totalorder %s24, 1
      %p98 = por %p96, %p97
      %p99 = scmp.ne.s32.totalorder %s90, %s91
      %p100 = scmp.eq.s32.totalorder %s24, 0
      %p101 = por %p99, %p100
      %p102 = scmp.ne.s32.totalorder %s90, %s91
      %p103 = scmp.eq.s32.totalorder %s25, 1
      %p104 = por %p102, %p103
      %p106 = scmp.ne.s32.totalorder %s91, %s105
      %p107 = scmp.eq.s32.totalorder %s25, 0
      %p108 = por %p106, %p107
      %s110 = sadd.s32 %s109, 1
      %p113 = scmp.eq.s32.totalorder %s19, 1
      %p114 = scmp.ne.s32.totalorder %s109, %s111
      %p115 = scmp.eq.s32.totalorder %s19, 0
      %p116 = por %p114, %p115
      %p117 = scmp.ne.s32.totalorder %s109, %s111
      %p118 = scmp.eq.s32.totalorder %s24, 1
      %p119 = por %p117, %p118
      %p120 = scmp.ne.s32.totalorder %s111, %s112
      %p121 = scmp.eq.s32.totalorder %s24, 0
      %p122 = por %p120, %p121
      %p123 = scmp.ne.s32.totalorder %s111, %s112
      %p124 = scmp.eq.s32.totalorder %s25, 1
      %p125 = por %p123, %p124
      %p127 = scmp.ne.s32.totalorder %s112, %s126
      %p128 = scmp.eq.s32.totalorder %s25, 0
      %p129 = por %p127, %p128
      %s130 = ssub.s32 %s26, %s38
      %p131 = scmp.eq.s32.totalorder %s130, 0
      %s133 = sadd.s32 %s132, 1
      %s134 = scalar_select %p131, %s132, %s133
      %p137 = pneg %p131
      %p138 = scmp.eq.s32.totalorder %s19, 1
      %p139 = por %p137, %p138
      %p140 = scmp.ne.s32.totalorder %s132, %s135
      %p141 = scmp.eq.s32.totalorder %s19, 0
      %p142 = por %p140, %p141
      %p143 = scmp.ne.s32.totalorder %s132, %s135
      %p144 = scmp.eq.s32.totalorder %s24, 1
      %p145 = por %p143, %p144
      %p146 = scmp.ne.s32.totalorder %s135, %s136
      %p147 = scmp.eq.s32.totalorder %s24, 0
      %p148 = por %p146, %p147
      %p149 = scmp.ne.s32.totalorder %s135, %s136
      %p150 = scmp.eq.s32.totalorder %s25, 1
      %p151 = por %p149, %p150
      %p153 = scmp.ne.s32.totalorder %s136, %s152
      %p154 = scmp.eq.s32.totalorder %s25, 0
      %p155 = por %p153, %p154
      %s156 = ssub.s32 %s26, %s38
      %s157 = ssub.s32 %s27, %s34
      %s158 = sor.u32 %s156, %s157
      %p159 = scmp.eq.s32.totalorder %s158, 0
      %s161 = sadd.s32 %s160, 1
      %s162 = scalar_select %p159, %s160, %s161
      %p165 = pneg %p159
      %p166 = scmp.eq.s32.totalorder %s19, 1
      %p167 = por %p165, %p166
      %p168 = scmp.ne.s32.totalorder %s160, %s163
      %p169 = scmp.eq.s32.totalorder %s19, 0
      %p170 = por %p168, %p169
      %p171 = scmp.ne.s32.totalorder %s160, %s163
      %p172 = scmp.eq.s32.totalorder %s24, 1
      %p173 = por %p171, %p172
      %p174 = scmp.ne.s32.totalorder %s163, %s164
      %p175 = scmp.eq.s32.totalorder %s24, 0
      %p176 = por %p174, %p175
      %p177 = scmp.ne.s32.totalorder %s163, %s164
      %p178 = scmp.eq.s32.totalorder %s25, 1
      %p179 = por %p177, %p178
      %p181 = scmp.ne.s32.totalorder %s164, %s180
      %p182 = scmp.eq.s32.totalorder %s25, 0
      %p183 = por %p181, %p182
      %s184 = ssub.s32 %s26, %s38
      %s185 = ssub.s32 %s27, %s34
      %s186 = sor.u32 %s184, %s185
      %p187 = scmp.eq.s32.totalorder %s186, 0
      %s189 = sadd.s32 %s188, 1
      %s190 = scalar_select %p187, %s188, %s189
      %p193 = pneg %p187
      %p194 = scmp.eq.s32.totalorder %s19, 1
      %p195 = por %p193, %p194
      %p196 = scmp.ne.s32.totalorder %s188, %s191
      %p197 = scmp.eq.s32.totalorder %s19, 0
      %p198 = por %p196, %p197
      %p199 = scmp.ne.s32.totalorder %s188, %s191
      %p200 = scmp.eq.s32.totalorder %s24, 1
      %p201 = por %p199, %p200
      %p202 = scmp.ne.s32.totalorder %s191, %s192
      %p203 = scmp.eq.s32.totalorder %s24, 0
      %p204 = por %p202, %p203
      %p205 = scmp.ne.s32.totalorder %s191, %s192
      %p206 = scmp.eq.s32.totalorder %s25, 1
      %p207 = por %p205, %p206
      %p209 = scmp.ne.s32.totalorder %s192, %s208
      %p210 = scmp.eq.s32.totalorder %s25, 0
      %p211 = por %p209, %p210
      %p212 = scmp.le.s32.totalorder 1, %s19
      %p213 = scmp.lt.s32.totalorder %s19, 3
      %p214 = pnand %p212, %p213
      %p215 = pneg %p214
      // Predicated region
      $region9: #{tpu_custom_call.1} parent=5 // pred_check
        _
      $region10: #{tpu_custom_call.1} parent=5 // pred_check_branch
        %217 = sbr.rel (%p214) target = $region12
      $region11: #{tpu_custom_call.1} parent=5 // pred_region
        %s218 = ssub.s32 %s19, 1
        // Predicated region
        $region13: #{tpu_custom_call.1} parent=11 // pred_check
          %p219 = pneg %p80
        $region14: #{tpu_custom_call.1} parent=11 // pred_check_branch
          %221 = sbr.rel (%p219) target = $region16
        $region15: #{tpu_custom_call.1} parent=11 // pred_region
          _
        $region16: #{tpu_custom_call.1} parent=11 // pred_fallthru
          _
        // Predicated region
        $region17: #{tpu_custom_call.1} parent=11 // pred_check
          %p222 = pneg %p101
        $region18: #{tpu_custom_call.1} parent=11 // pred_check_branch
          %224 = sbr.rel (%p222) target = $region20
        $region19: #{tpu_custom_call.1} parent=11 // pred_region
          _
        $region20: #{tpu_custom_call.1} parent=11 // pred_fallthru
          _
        // Predicated region
        $region21: #{tpu_custom_call.1} parent=11 // pred_check
          %p225 = pneg %p122
        $region22: #{tpu_custom_call.1} parent=11 // pred_check_branch
          %227 = sbr.rel (%p225) target = $region24
        $region23: #{tpu_custom_call.1} parent=11 // pred_region
          _
        $region24: #{tpu_custom_call.1} parent=11 // pred_fallthru
          _
      $region12: #{tpu_custom_call.1} parent=5 // pred_fallthru
        _
      %p228 = scmp.lt.s32.totalorder %s19, 2
      // Predicated region
      $region25: #{tpu_custom_call.1} parent=5 // pred_check
        %p229 = pneg %p228
      $region26: #{tpu_custom_call.1} parent=5 // pred_check_branch
        %231 = sbr.rel (%p229) target = $region28
      $region27: #{tpu_custom_call.1} parent=5 // pred_region
        // Predicated region
        $region29: #{tpu_custom_call.1} parent=27 // pred_check
          %p232 = pneg %p53
        $region30: #{tpu_custom_call.1} parent=27 // pred_check_branch
          %234 = sbr.rel (%p232) target = $region32
        $region31: #{tpu_custom_call.1} parent=27 // pred_region
          %p235 = scmp.lt.s32.totalorder %s26, 1
          %s236 = scalar_select %p235, %s26, 1
          %p237 = scmp.lt.s32.totalorder %s27, 0
          %s238 = scalar_select %p237, %s27, 0
          %s239 = sadd.s32 %s238, %s236
          %s240 = smul.addr %s239, 8
          %s241 = scalar_lea.vmem %s0, %s240
        $region32: #{tpu_custom_call.1} parent=27 // pred_fallthru
          _
        // Predicated region
        $region33: #{tpu_custom_call.1} parent=27 // pred_check
          %p242 = pneg %p142
        $region34: #{tpu_custom_call.1} parent=27 // pred_check_branch
          %244 = sbr.rel (%p242) target = $region36
        $region35: #{tpu_custom_call.1} parent=27 // pred_region
          %p245 = scmp.lt.s32.totalorder %s26, 1
          %s246 = scalar_select %p245, %s26, 1
          %s247 = scalar_lea.vmem %s4, %s246
        $region36: #{tpu_custom_call.1} parent=27 // pred_fallthru
          _
      $region28: #{tpu_custom_call.1} parent=5 // pred_fallthru
        _
      %p248 = scmp.le.s32.totalorder 1, %s19
      %p249 = scmp.lt.s32.totalorder %s19, 3
      %p250 = pnand %p248, %p249
      %p251 = pneg %p250
      // Predicated region
      $region37: #{tpu_custom_call.1} parent=5 // pred_check
        _
      $region38: #{tpu_custom_call.1} parent=5 // pred_check_branch
        %253 = sbr.rel (%p250) target = $region40
      $region39: #{tpu_custom_call.1} parent=5 // pred_region
        %s254 = ssub.s32 %s19, 1
        %p255 = scmp.lt.s32.totalorder %s28, 1
        %s256 = scalar_select %p255, %s28, 1
        %p257 = scmp.lt.s32.totalorder %s29, 0
        %s258 = scalar_select %p257, %s29, 0
        %s259 = sadd.s32 %s258, %s256
        %s260 = smul.addr %s259, 8
        %s261 = scalar_lea.vmem %s0, %s260
        %p262 = pneg %p59
        %p263 = pneg %p56
        %p264 = pneg %p80
        %p265 = pneg %p77
        %p266 = pneg %p101
        %p267 = pneg %p98
        %p268 = pneg %p122
        %p269 = pneg %p119
        %p270 = scmp.lt.s32.totalorder %s28, 1
        %s271 = scalar_select %p270, %s28, 1
        %s272 = scalar_lea.vmem %s4, %s271
        %p273 = pneg %p148
        %p274 = pneg %p145
        %p275 = pneg %p176
        %p276 = pneg %p173
        %s277 = sand.u32 %s163, 1
        %s278 = scalar_lea.sflag [#allocation3], %s277
        %s279 = sand.u32 %s163, 1
        %s280 = smul.addr %s279, 8
        %s281 = scalar_lea.vmem [#allocation2], %s280
        %p282 = pneg %p204
        %p283 = pneg %p201
        %s284 = sand.u32 %s191, 1
        %s285 = scalar_lea.sflag [#allocation5], %s284
        %s286 = sand.u32 %s191, 1
        %s287 = smul.addr %s286, 8
        %s288 = scalar_lea.vmem [#allocation4], %s287
        %p289 = scmp.lt.s32.totalorder %s28, 1
        %s290 = scalar_select %p289, %s28, 1
        %p291 = scmp.lt.s32.totalorder %s29, 0
        %s292 = scalar_select %p291, %s29, 0
        %s293 = sadd.s32 %s292, %s290
        %s294 = smul.addr %s293, 8
        %s295 = scalar_lea.vmem %s0, %s294
        %p296 = scmp.lt.s32.totalorder %s28, 1
        %s297 = scalar_select %p296, %s28, 1
        %s298 = scalar_lea.vmem %s4, %s297
        %v299 = vld [vmem:[%s295] sm:$0xff]
        %v300 = vld [vmem:[%s1] sm:$0xff]
        %v301 = vld [vmem:[%s1 + $0x8] sm:$0xff]
        %v302 = vld [vmem:[%s1 + $0x10] sm:$0xff]
        %v303 = vld [vmem:[%s1 + $0x18] sm:$0xff]
        %vm304 = vcmask 261120
        %v306 = vsel %vm304, %v299, 0
        %308 = vmatprep.subr.mxu0 0.0
        %309 = vmatpush1.msra.mxu0 0.0
        %310 = vmatprep.subr.mxu0 0.0
        %311 = vmatpush1.msra.mxu0 0.0
        %312 = vmatprep.subr.mxu0 0.0
        %313 = vmatpush1.msra.mxu0 0.0
        %314 = vmatprep.subr.mxu0 0.0
        %315 = vmatpush1.msra.mxu0 0.0
        %316 = vmatprep.subr.mxu0 0.0
        %317 = vmatpush1.msra.mxu0 0.0
        %318 = vmatprep.subr.mxu0 0.0
        %319 = vmatpush1.msra.mxu0 0.0
        %320 = vmatprep.subr.mxu0 0.0
        %321 = vmatpush1.msra.mxu0 0.0
        %322 = vmatprep.subr.mxu0 0.0
        %323 = vmatpush1.msra.mxu0 0.0
        %324 = vmatprep.subr.mxu0 0.0
        %325 = vmatpush1.msra.mxu0 0.0
        %326 = vmatprep.subr.mxu0 0.0
        %327 = vmatpush1.msra.mxu0 0.0
        %328 = vmatprep.subr.mxu0 0.0
        %329 = vmatpush1.msra.mxu0 0.0
        %330 = vmatprep.subr.mxu0 0.0
        %331 = vmatpush1.msra.mxu0 0.0
        %332 = vmatprep.subr.mxu0 0.0
        %333 = vmatpush1.msra.mxu0 %v303
        %334 = vmatprep.subr.mxu0 0.0
        %335 = vmatpush1.msra.mxu0 %v302
        %336 = vmatprep.subr.mxu0 0.0
        %337 = vmatpush1.msra.mxu0 %v301
        %338 = vmatprep.subr.mxu0 0.0
        %339 = vmatpush1.msra.mxu0 %v300
        %340 = vmatprep.subr.mxu0 0.0
        %341 = vmatpush2.msra.mxu0 0.0
        %342 = vmatprep.subr.mxu0 0.0
        %343 = vmatpush2.msra.mxu0 0.0
        %344 = vmatprep.subr.mxu0 0.0
        %345 = vmatpush2.msra.mxu0 0.0
        %346 = vmatprep.subr.mxu0 0.0
        %347 = vmatpush2.msra.mxu0 0.0
        %348 = vmatprep.subr.mxu0 0.0
        %349 = vmatpush2.msra.mxu0 0.0
        %350 = vmatprep.subr.mxu0 0.0
        %351 = vmatpush2.msra.mxu0 0.0
        %352 = vmatprep.subr.mxu0 0.0
        %353 = vmatpush2.msra.mxu0 0.0
        %354 = vmatprep.subr.mxu0 0.0
        %355 = vmatpush2.msra.mxu0 0.0
        %356 = vmatprep.subr.mxu0 0.0
        %357 = vmatpush2.msra.mxu0 0.0
        %358 = vmatprep.subr.mxu0 0.0
        %359 = vmatpush2.msra.mxu0 0.0
        %360 = vmatprep.subr.mxu0 0.0
        %361 = vmatpush2.msra.mxu0 0.0
        %362 = vmatprep.subr.mxu0 0.0
        %363 = vmatpush2.msra.mxu0 0.0
        %364 = vmatprep.subr.mxu0 0.0
        %365 = vmatpush2.msra.mxu0 0.0
        %366 = vmatprep.subr.mxu0 0.0
        %367 = vmatpush2.msra.mxu0 0.0
        %368 = vmatprep.subr.mxu0 0.0
        %369 = vmatpush2.msra.mxu0 0.0
        %370 = vmatprep.subr.mxu0 0.0
        %371 = vmatpush2.msra.mxu0 0.0
        %372 = vmatprep.mubr.f32.mxu0 0.0
        %373 = vmatmul.mubr.f32.gmra.mxu0 %v306
        %v374 = vpop.f32.mrf.mxu0
        %v375 = vadd.f32 0.0, %v374
        %v376 = vpop.f32.mrf.mxu0
        %377 = vdwg.mxu0
        %v378 = vld [vmem:[%s2] sm:$0x1]
        %v380 = vlaneseq
        %v381 = vshrl.u32 %v380, 7
        %v382 = vsub.s32 0, %v381
        %v383 = vrot.slane %v378, %v382
        %384 = vrot.lane.b32.xlu0 %v383, 8
        %v385 = vpop.permute.xlu0 %384
        %v387 = vadd.f32 %v375, %v385
        %389 = vrot.lane.b32.xlu0 %v387, 120
        %v390 = vpop.permute.xlu0 %389
        %vm392 = vcmask 130048
        %393 = vst.msk [vmem:[%s281] sm:$0xff] %vm392, %v390
        %v394 = vld [vmem:[%s3] sm:$0xff]
        %v395 = vld [vmem:[%s298] sm:$0x1]
        %v397 = vlaneseq
        %v398 = vshrl.u32 %v397, 7
        %v399 = vsub.s32 0, %v398
        %v400 = vrot.slane %v395, %v399
        %vm402 = vcmask 64512
        %v404 = vsel %vm402, %v375, 0
        %406 = vmatprep.subr.mxu0 0.0
        %407 = vmatpush1.msra.mxu0 0.0
        %408 = vmatprep.subr.mxu0 0.0
        %409 = vmatpush1.msra.mxu0 0.0
        %410 = vmatprep.subr.mxu0 0.0
        %411 = vmatpush1.msra.mxu0 0.0
        %412 = vmatprep.subr.mxu0 0.0
        %413 = vmatpush1.msra.mxu0 0.0
        %414 = vmatprep.subr.mxu0 0.0
        %415 = vmatpush1.msra.mxu0 0.0
        %416 = vmatprep.subr.mxu0 0.0
        %417 = vmatpush1.msra.mxu0 0.0
        %418 = vmatprep.subr.mxu0 0.0
        %419 = vmatpush1.msra.mxu0 0.0
        %420 = vmatprep.subr.mxu0 0.0
        %421 = vmatpush1.msra.mxu0 0.0
        %422 = vmatprep.subr.mxu0 0.0
        %423 = vmatpush1.msra.mxu0 0.0
        %424 = vmatprep.subr.mxu0 0.0
        %425 = vmatpush1.msra.mxu0 0.0
        %426 = vmatprep.subr.mxu0 0.0
        %427 = vmatpush1.msra.mxu0 0.0
        %428 = vmatprep.subr.mxu0 0.0
        %429 = vmatpush1.msra.mxu0 0.0
        %430 = vmatprep.subr.mxu0 0.0
        %431 = vmatpush1.msra.mxu0 0.0
        %432 = vmatprep.subr.mxu0 0.0
        %433 = vmatpush1.msra.mxu0 0.0
        %434 = vmatprep.subr.mxu0 0.0
        %435 = vmatpush1.msra.mxu0 0.0
        %436 = vmatprep.subr.mxu0 0.0
        %437 = vmatpush1.msra.mxu0 %v394
        %438 = vmatprep.subr.mxu0 0.0
        %439 = vmatpush2.msra.mxu0 0.0
        %440 = vmatprep.subr.mxu0 0.0
        %441 = vmatpush2.msra.mxu0 0.0
        %442 = vmatprep.subr.mxu0 0.0
        %443 = vmatpush2.msra.mxu0 0.0
        %444 = vmatprep.subr.mxu0 0.0
        %445 = vmatpush2.msra.mxu0 0.0
        %446 = vmatprep.subr.mxu0 0.0
        %447 = vmatpush2.msra.mxu0 0.0
        %448 = vmatprep.subr.mxu0 0.0
        %449 = vmatpush2.msra.mxu0 0.0
        %450 = vmatprep.subr.mxu0 0.0
        %451 = vmatpush2.msra.mxu0 0.0
        %452 = vmatprep.subr.mxu0 0.0
        %453 = vmatpush2.msra.mxu0 0.0
        %454 = vmatprep.subr.mxu0 0.0
        %455 = vmatpush2.msra.mxu0 0.0
        %456 = vmatprep.subr.mxu0 0.0
        %457 = vmatpush2.msra.mxu0 0.0
        %458 = vmatprep.subr.mxu0 0.0
        %459 = vmatpush2.msra.mxu0 0.0
        %460 = vmatprep.subr.mxu0 0.0
        %461 = vmatpush2.msra.mxu0 0.0
        %462 = vmatprep.subr.mxu0 0.0
        %463 = vmatpush2.msra.mxu0 0.0
        %464 = vmatprep.subr.mxu0 0.0
        %465 = vmatpush2.msra.mxu0 0.0
        %466 = vmatprep.subr.mxu0 0.0
        %467 = vmatpush2.msra.mxu0 0.0
        %468 = vmatprep.subr.mxu0 0.0
        %469 = vmatpush2.msra.mxu0 0.0
        %470 = vmatprep.mubr.f32.mxu0 0.0
        %471 = vmatmul.mubr.f32.gmra.mxu0 %v404
        %v472 = vpop.f32.mrf.mxu0
        %v473 = vadd.f32 %v400, %v472
        %v474 = vpop.f32.mrf.mxu0
        %475 = vdwg.mxu0
        %vm476 = vcmask 523264
        %477 = vst.msk [vmem:[%s288] sm:$0xff] %vm476, %v473
        %s478 = sand.u32 %s163, 1
        %s479 = scalar_lea.sflag [#allocation3], %s478
        %s480 = sand.u32 %s163, 1
        %s481 = smul.addr %s480, 8
        %s482 = scalar_lea.vmem [#allocation2], %s481
        %s483 = sand.u32 %s191, 1
        %s484 = scalar_lea.sflag [#allocation5], %s483
        %s485 = sand.u32 %s191, 1
        %s486 = smul.addr %s485, 8
        %s487 = scalar_lea.vmem [#allocation4], %s486
        // Predicated region
        $region41: #{tpu_custom_call.1} parent=39 // pred_check
          %p488 = pneg %p173
        $region42: #{tpu_custom_call.1} parent=39 // pred_check_branch
          %490 = sbr.rel (%p488) target = $region44
        $region43: #{tpu_custom_call.1} parent=39 // pred_region
          %s492 = ssub.s32 128, 128
          %493 = vsyncadd %s479, %s492
          %s494 = sadd.s32 %s29, %s28
          %s495 = smul.addr %s494, 128
          %s496 = scalar_lea.hbm %s5, %s495
          %s498 = sshll.u32 %s482, 4
          %s499 = int_to_ptr.vmem [resolvable:$true] %s498
          %501 = dma.vmem_to_hbm [thread:$0]  %s499, 128, %s496, %s479
        $region44: #{tpu_custom_call.1} parent=39 // pred_fallthru
          _
        // Predicated region
        $region45: #{tpu_custom_call.1} parent=39 // pred_check
          %p502 = pneg %p201
        $region46: #{tpu_custom_call.1} parent=39 // pred_check_branch
          %504 = sbr.rel (%p502) target = $region48
        $region47: #{tpu_custom_call.1} parent=39 // pred_region
          %s506 = ssub.s32 128, 128
          %507 = vsyncadd %s484, %s506
          %s508 = sadd.s32 %s29, %s28
          %s509 = smul.addr %s508, 128
          %s510 = scalar_lea.hbm %s6, %s509
          %s512 = sshll.u32 %s487, 4
          %s513 = int_to_ptr.vmem [resolvable:$true] %s512
          %515 = dma.vmem_to_hbm [thread:$0]  %s513, 128, %s510, %s484
        $region48: #{tpu_custom_call.1} parent=39 // pred_fallthru
          _
      $region40: #{tpu_custom_call.1} parent=5 // pred_fallthru
        _
      %p516 = scmp.le.s32.totalorder 2, %s19
      // Predicated region
      $region49: #{tpu_custom_call.1} parent=5 // pred_check
        %p517 = pneg %p516
      $region50: #{tpu_custom_call.1} parent=5 // pred_check_branch
        %519 = sbr.rel (%p517) target = $region52
      $region51: #{tpu_custom_call.1} parent=5 // pred_region
        %s520 = ssub.s32 %s19, 2
        // Predicated region
        $region53: #{tpu_custom_call.1} parent=51 // pred_check
          %p521 = pneg %p179
        $region54: #{tpu_custom_call.1} parent=51 // pred_check_branch
          %523 = sbr.rel (%p521) target = $region56
        $region55: #{tpu_custom_call.1} parent=51 // pred_region
          %s524 = sand.u32 %s164, 1
          %s525 = scalar_lea.sflag [#allocation3], %s524
          %s526 = sand.u32 %s164, 1
          %s527 = smul.addr %s526, 8
          %s528 = scalar_lea.vmem [#allocation2], %s527
          %529 = dma.done %s525, 128
        $region56: #{tpu_custom_call.1} parent=51 // pred_fallthru
          _
        // Predicated region
        $region57: #{tpu_custom_call.1} parent=51 // pred_check
          %p530 = pneg %p207
        $region58: #{tpu_custom_call.1} parent=51 // pred_check_branch
          %532 = sbr.rel (%p530) target = $region60
        $region59: #{tpu_custom_call.1} parent=51 // pred_region
          %s533 = sand.u32 %s192, 1
          %s534 = scalar_lea.sflag [#allocation5], %s533
          %s535 = sand.u32 %s192, 1
          %s536 = smul.addr %s535, 8
          %s537 = scalar_lea.vmem [#allocation4], %s536
          %538 = dma.done %s534, 128
        $region60: #{tpu_custom_call.1} parent=51 // pred_fallthru
          _
      $region52: #{tpu_custom_call.1} parent=5 // pred_fallthru
        _
    $region6: #{tpu_custom_call.1} parent=1 // loop_footer
      %s23 = sadd.s32 1, %s19
    $region7: #{tpu_custom_call.1} parent=1 // loop_footer_branch
      %18 = sbr.rel target = $region3
    $region8: #{tpu_custom_call.1} parent=1 // loop_exit
      _
    %539 = vsyncpa [#allocation3], 1
    %s540 = scalar_lea.sflag [#allocation3], 1
    %541 = vsyncpa %s540, 1
    %542 = vsyncpa [#allocation5], 1
    %s543 = scalar_lea.sflag [#allocation5], 1
    %544 = vsyncpa %s543, 1

</llo_original>
